<compile_context>
chip_gen: v7x
topology: tpu7x:2x2x1
jax: 0.10.0
libtpu: 0.0.40
codegen_flags: <defaults>
</compile_context>

<pallas_src>
import functools

import jax
import jax.numpy as jnp
from jax.experimental import pallas as pl
from jax.experimental.pallas import tpu as pltpu

DECAY_FACTOR = 0.05


def _triplet_kernel(triplet_ref, partial_ref, *, margin, total_b, tile_b):
    """One batch tile.

    triplet_ref: (3, tile_b, D) VMEM block -> [anchor, positive, negative].
    partial_ref: (1, 3) SMEM block -> [hinge_sum, sum(dist_pos), sum(dist_neg)].
    """
    i = pl.program_id(0)

    a = triplet_ref[0].astype(jnp.float32)   # (tile_b, D)
    p = triplet_ref[1].astype(jnp.float32)
    n = triplet_ref[2].astype(jnp.float32)

    dp = a - p
    dn = a - n
    d2_pos = jnp.sum(dp * dp, axis=1, keepdims=True)   # (tile_b, 1)
    d2_neg = jnp.sum(dn * dn, axis=1, keepdims=True)   # (tile_b, 1)

    # Mask rows that are padding (B rounded up to a multiple of tile_b).
    row = i * tile_b + jax.lax.broadcasted_iota(jnp.int32, (tile_b, 1), 0)
    valid = (row < total_b).astype(jnp.float32)

    hinge = jnp.maximum(margin + d2_pos - d2_neg, 0.0) * valid
    partial_ref[0, 0] = jnp.sum(hinge)
    partial_ref[0, 1] = jnp.sum(jnp.sqrt(d2_pos) * valid)
    partial_ref[0, 2] = jnp.sum(jnp.sqrt(d2_neg) * valid)


def _choose_tile_b(b, d, dtype_bytes, vmem_budget_bytes=8 * 1024 * 1024):
    # Pipeline holds 2 buffers of a (3, tile_b, D) block:
    #   3 * 2 * tile_b * d * dtype_bytes  <=  vmem_budget_bytes
    # 8 MiB budget stays well under the default scoped VMEM on every
    # generation (v5e 16 MiB / v6e 32 MiB / v7x 32 MiB of 64 MiB physical).
    max_rows = max(8, vmem_budget_bytes // (3 * 2 * d * dtype_bytes))
    tile_b = min(512, (max_rows // 8) * 8)
    b_pad8 = ((b + 7) // 8) * 8
    return max(8, min(tile_b, b_pad8))


def triplet_loss_forward(triplet, running_avg, margin):
    """triplet: (3, B, D). Returns (loss, new_running_avg)."""
    three, B, D = triplet.shape
    assert three == 3
    dtype_bytes = jnp.dtype(triplet.dtype).itemsize
    tile_b = _choose_tile_b(B, D, dtype_bytes)
    num_tiles = -(-B // tile_b)
    b_pad = num_tiles * tile_b
    if b_pad != B:
        triplet = jnp.pad(triplet, ((0, 0), (0, b_pad - B), (0, 0)))

    kernel = functools.partial(
        _triplet_kernel, margin=float(margin), total_b=B, tile_b=tile_b)

    partials = pl.pallas_call(
        kernel,
        out_shape=jax.ShapeDtypeStruct((num_tiles, 3), jnp.float32),
        grid=(num_tiles,),
        in_specs=[
            pl.BlockSpec((3, tile_b, D), lambda i: (0, i, 0)),
        ],
        out_specs=pl.BlockSpec(
            (1, 3), lambda i: (i, 0),
            memory_space=pltpu.MemorySpace.SMEM),
        compiler_params=pltpu.CompilerParams(
            dimension_semantics=("parallel",)),
    )(triplet)

    loss = jnp.sum(partials[:, 0])
    dist_means = jnp.stack(
        [jnp.sum(partials[:, 1]), jnp.sum(partials[:, 2])]) / B

    # no-grad buffer update (EMA of distance means) -- plain JAX glue.
    new_running_avg = (running_avg * (1.0 - DECAY_FACTOR)
                       + DECAY_FACTOR * dist_means)
    # TODO(synk): forward-only; no custom_vjp backward kernel is provided.
    return loss, new_running_avg


def _reference(triplet, running_avg, margin):
    a, p, n = triplet[0], triplet[1], triplet[2]
    dist_pos = jnp.sqrt(jnp.sum((a - p) ** 2, axis=1))
    dist_neg = jnp.sqrt(jnp.sum((a - n) ** 2, axis=1))
    loss = jnp.sum(jnp.maximum(margin + dist_pos ** 2 - dist_neg ** 2, 0.0))
    new_avg = running_avg * (1.0 - DECAY_FACTOR) + DECAY_FACTOR * jnp.stack(
        (jnp.mean(dist_pos), jnp.mean(dist_neg)))
    return loss, new_avg


if __name__ == "__main__":
    key = jax.random.PRNGKey(0)
    B, D = 8, 32
    margin = 1.0

    k0, k1, k2 = jax.random.split(key, 3)
    triplet = jnp.stack([
        jax.random.normal(k0, (B, D), dtype=jnp.float32),
        jax.random.normal(k1, (B, D), dtype=jnp.float32),
        jax.random.normal(k2, (B, D), dtype=jnp.float32),
    ])  # (3, B, D)

    running_avg = jnp.array([1.0, 1.0], dtype=jnp.float32)  # torch.Tensor([1,1])

    loss, new_avg = triplet_loss_forward(triplet, running_avg, margin)
    loss = jax.block_until_ready(loss)
    new_avg = jax.block_until_ready(new_avg)

    ref_loss, ref_avg = _reference(triplet, running_avg, margin)
    assert jnp.allclose(loss, ref_loss, rtol=1e-5, atol=1e-5), (loss, ref_loss)
    assert jnp.allclose(new_avg, ref_avg, rtol=1e-5, atol=1e-5), (new_avg, ref_avg)

    print("KERNEL_OK")
</pallas_src>

<mosaic_0001>
module attributes {stable_mosaic.version = 11 : i64} {
  func.func @_triplet_kernel(%arg0: i32, %arg1: memref<3x8x32xf32, #tpu.memory_space<vmem>>, %arg2: memref<1x3xf32, #tpu.memory_space<smem>>) attributes {dimension_semantics = [#tpu.dimension_semantics<parallel>], iteration_bounds = array<i64: 1>, scalar_prefetch = 0 : i64, scratch_operands = 0 : i64, tpu.core_type = #tpu.core_type<tc>, window_params = [{transform_indices = @transform_0, window_bounds = array<i64: 3, 8, 32>}, {transform_indices = @transform_1, window_bounds = array<i64: 1, 3>}]} {
    %c0 = arith.constant 0 : index
    %c0_0 = arith.constant 0 : index
    %c0_1 = arith.constant 0 : index
    %0 = vector.load %arg1[%c0, %c0_0, %c0_1] : memref<3x8x32xf32, #tpu.memory_space<vmem>>, vector<1x8x32xf32>
    %1 = vector.shape_cast %0 : vector<1x8x32xf32> to vector<8x32xf32>
    %c1 = arith.constant 1 : index
    %c0_2 = arith.constant 0 : index
    %c0_3 = arith.constant 0 : index
    %2 = vector.load %arg1[%c1, %c0_2, %c0_3] : memref<3x8x32xf32, #tpu.memory_space<vmem>>, vector<1x8x32xf32>
    %3 = vector.shape_cast %2 : vector<1x8x32xf32> to vector<8x32xf32>
    %c2 = arith.constant 2 : index
    %c0_4 = arith.constant 0 : index
    %c0_5 = arith.constant 0 : index
    %4 = vector.load %arg1[%c2, %c0_4, %c0_5] : memref<3x8x32xf32, #tpu.memory_space<vmem>>, vector<1x8x32xf32>
    %5 = vector.shape_cast %4 : vector<1x8x32xf32> to vector<8x32xf32>
    %6 = arith.subf %1, %3 : vector<8x32xf32>
    %7 = arith.subf %1, %5 : vector<8x32xf32>
    %8 = arith.mulf %6, %6 : vector<8x32xf32>
    %cst = arith.constant dense<0.000000e+00> : vector<8xf32>
    %9 = vector.multi_reduction <add>, %8, %cst [1] : vector<8x32xf32> to vector<8xf32>
    %10 = vector.shape_cast %9 : vector<8xf32> to vector<8x1xf32>
    %11 = arith.mulf %7, %7 : vector<8x32xf32>
    %cst_6 = arith.constant dense<0.000000e+00> : vector<8xf32>
    %12 = vector.multi_reduction <add>, %11, %cst_6 [1] : vector<8x32xf32> to vector<8xf32>
    %13 = vector.shape_cast %12 : vector<8xf32> to vector<8x1xf32>
    %c8_i32 = arith.constant 8 : i32
    %14 = arith.muli %arg0, %c8_i32 : i32
    %15 = tpu.iota {dimensions = array<i32: 0>} : vector<8x1xi32>
    %16 = vector.broadcast %14 : i32 to vector<8x1xi32>
    %17 = arith.addi %16, %15 : vector<8x1xi32>
    %c8_i32_7 = arith.constant 8 : i32
    %18 = vector.broadcast %c8_i32_7 : i32 to vector<8x1xi32>
    %19 = arith.cmpi slt, %17, %18 : vector<8x1xi32>
    %20 = arith.extui %19 : vector<8x1xi1> to vector<8x1xi32>
    %21 = arith.sitofp %20 : vector<8x1xi32> to vector<8x1xf32>
    %cst_8 = arith.constant 1.000000e+00 : f32
    %22 = vector.broadcast %cst_8 : f32 to vector<8x1xf32>
    %23 = arith.addf %22, %10 : vector<8x1xf32>
    %24 = arith.subf %23, %13 : vector<8x1xf32>
    %cst_9 = arith.constant 0.000000e+00 : f32
    %25 = vector.broadcast %cst_9 : f32 to vector<8x1xf32>
    %26 = arith.maximumf %24, %25 : vector<8x1xf32>
    %27 = arith.mulf %26, %21 : vector<8x1xf32>
    %28 = vector.shape_cast %27 : vector<8x1xf32> to vector<1x8x1xf32>
    %cst_10 = arith.constant dense<0.000000e+00> : vector<1xf32>
    %29 = vector.multi_reduction <add>, %28, %cst_10 [1, 2] : vector<1x8x1xf32> to vector<1xf32>
    %30 = vector.shape_cast %29 : vector<1xf32> to vector<1x1x1xf32>
    %31 = vector.extract %30[0, 0, 0] : f32 from vector<1x1x1xf32>
    %c0_11 = arith.constant 0 : index
    %c0_12 = arith.constant 0 : index
    %32 = memref.load %arg2[%c0_11, %c0_12] : memref<1x3xf32, #tpu.memory_space<smem>>
    memref.store %31, %arg2[%c0_11, %c0_12] : memref<1x3xf32, #tpu.memory_space<smem>>
    %33 = math.sqrt %10 : vector<8x1xf32>
    %34 = arith.mulf %33, %21 : vector<8x1xf32>
    %35 = vector.shape_cast %34 : vector<8x1xf32> to vector<1x8x1xf32>
    %cst_13 = arith.constant dense<0.000000e+00> : vector<1xf32>
    %36 = vector.multi_reduction <add>, %35, %cst_13 [1, 2] : vector<1x8x1xf32> to vector<1xf32>
    %37 = vector.shape_cast %36 : vector<1xf32> to vector<1x1x1xf32>
    %38 = vector.extract %37[0, 0, 0] : f32 from vector<1x1x1xf32>
    %c0_14 = arith.constant 0 : index
    %c1_15 = arith.constant 1 : index
    %39 = memref.load %arg2[%c0_14, %c1_15] : memref<1x3xf32, #tpu.memory_space<smem>>
    memref.store %38, %arg2[%c0_14, %c1_15] : memref<1x3xf32, #tpu.memory_space<smem>>
    %40 = math.sqrt %13 : vector<8x1xf32>
    %41 = arith.mulf %40, %21 : vector<8x1xf32>
    %42 = vector.shape_cast %41 : vector<8x1xf32> to vector<1x8x1xf32>
    %cst_16 = arith.constant dense<0.000000e+00> : vector<1xf32>
    %43 = vector.multi_reduction <add>, %42, %cst_16 [1, 2] : vector<1x8x1xf32> to vector<1xf32>
    %44 = vector.shape_cast %43 : vector<1xf32> to vector<1x1x1xf32>
    %45 = vector.extract %44[0, 0, 0] : f32 from vector<1x1x1xf32>
    %c0_17 = arith.constant 0 : index
    %c2_18 = arith.constant 2 : index
    %46 = memref.load %arg2[%c0_17, %c2_18] : memref<1x3xf32, #tpu.memory_space<smem>>
    memref.store %45, %arg2[%c0_17, %c2_18] : memref<1x3xf32, #tpu.memory_space<smem>>
    return
  }
  func.func @transform_0(%arg0: i32) -> (i32, i32, i32) {
    %c0_i32 = arith.constant 0 : i32
    %c0_i32_0 = arith.constant 0 : i32
    %c0_i32_1 = arith.constant 0 : i32
    return %c0_i32, %arg0, %c0_i32_0 : i32, i32, i32
  }
  func.func @transform_1(%arg0: i32) -> (i32, i32) {
    %c0_i32 = arith.constant 0 : i32
    %c0_i32_0 = arith.constant 0 : i32
    return %arg0, %c0_i32 : i32, i32
  }
}

</mosaic_0001>

<llo_original>
// kernel: tpu_custom_call.1
$region0: #{tpu_custom_call.1}
  #allocation0 [shape = 'u32[]', space=smem, size = 0x4, offset = 0x4, fixed_abs, tag = 'smem constant byte address 0x4 - core index']
  #allocation1 [shape = 'u32[144,128]{1,0:T(1,128)}', space=vmem, size = 0x12000, scoped, tag = 'internal scratch']
  %s0 = inlined_call_operand.hbm [shape: f32[3,8,32], index: 0, kind: input, shape index: {}]
  %s1 = inlined_call_operand.hbm [shape: f32[1,3], index: 1, kind: output, shape index: {}]
  %s2 = sld [smem:[#allocation0]]
  $region18: #{tpu_custom_call.1} parent=0
    _
  %s4 = ssub.s32 1, %s2
  %s5 = scalar_select 0, %s4, %s2
  $region1: #{tpu_custom_call.1} parent=0
    #allocation2 [shape = 'u8[12288]{0}', space=vmem, size = 0x3000, scoped, tag = 'input window, operand 0, single buffered']
    #allocation3 [shape = 's32[1]{0}', space=sflag, size = 0x4, scoped, tag = 'scoped memory for tpu_custom_call.1']
    #allocation4 [shape = 's32[1]{0}', space=sflag, size = 0x4, scoped, tag = 'scoped memory for tpu_custom_call.1']
    #allocation5 [shape = 'u8[512]{0}', space=smem, size = 0x200, scoped, tag = 'output window, operand 0, single buffered']
    %6 = vsyncpa [#allocation3], 0
    %7 = vsyncpa [#allocation4], 0
    // Predicated region
    $region2: #{tpu_custom_call.1} parent=1 // pred_check
      _
    $region3: #{tpu_custom_call.1} parent=1 // pred_check_branch
      %9 = sbr.rel (0) target = $region5
    $region4: #{tpu_custom_call.1} parent=1 // pred_region
      %s11 = ssub.s32 384, 384
      %12 = vsyncadd [#allocation3], %s11
      %s13 = sshll.u32 [#allocation2], 4
      %s14 = int_to_ptr.vmem [resolvable:$true] %s13
      %19 = dma.hbm_to_vmem [thread:$0]  %s0, 384, %s14, [#allocation3], 128, 128, 8
    $region5: #{tpu_custom_call.1} parent=1 // pred_fallthru
      _
    // Predicated region
    $region6: #{tpu_custom_call.1} parent=1 // pred_check
      _
    $region7: #{tpu_custom_call.1} parent=1 // pred_check_branch
      %21 = sbr.rel (0) target = $region9
    $region8: #{tpu_custom_call.1} parent=1 // pred_region
      %22 = dma.done [#allocation3], 384
    $region9: #{tpu_custom_call.1} parent=1 // pred_fallthru
      _
    %v23 = vld [vmem:[#allocation2] sm:$0xff]
    %s24 = scalar_lea.vmem [#allocation2], 8
    %v25 = vld [vmem:[%s24] sm:$0xff]
    %s26 = scalar_lea.vmem [#allocation2], 16
    %v27 = vld [vmem:[%s26] sm:$0xff]
    %v28 = vsub.f32 %v23, %v25
    %v29 = vsub.f32 %v23, %v27
    %v30 = vmul.f32 %v28, %v28
    %vm31 = vcmask 261120
    %v32 = vsel %vm31, %v30, 0.0
    %33 = vadd.xlane.f32.xlu0 %v32
    %v34 = vpop.xlane.xlu0 %33
    %v35 = vmul.f32 %v29, %v29
    %v36 = vsel %vm31, %v35, 0.0
    %37 = vadd.xlane.f32.xlu0 %v36
    %v38 = vpop.xlane.xlu0 %37
    %s39 = smul.u32 0, 8
    %v40 = vlaneseq
    %v41 = vshrl.u32 %v40, 7
    %v42 = vstv %s39
    %v43 = vadd.s32 %v42, %v41
    %vm44 = vcmp.lt.s32.totalorder %v43, 8
    %v45 = vsel %vm44, 1, 0
    %v46 = vcvt.s32.f32 %v45
    %v47 = vadd.f32 %v34, 1.0
    %v48 = vsub.f32 %v47, %v38
    %v49 = vmax.f32 %v48, 0.0
    %v50 = vmul.f32 %v49, %v46
    %vm51 = vcmask 7168
    %v52 = vsel %vm51, %v50, 0.0
    %53 = vadd.xlane.f32.xlu0 %v52
    %v54 = vpop.xlane.xlu0 %53
    %v55 = vrot.slane %v54, 4
    %v56 = vadd.f32 %v54, %v55
    %v57 = vrot.slane %v56, 2
    %v58 = vadd.f32 %v56, %v57
    %v59 = vrot.slane %v58, 1
    %v60 = vadd.f32 %v58, %v59
    %s61 = vtos %v60
    %s62 = scalar_lea.smem [#allocation5], 0
    %63 = sst [smem:[%s62]] %s61
    %v64 = vrsqrt.pop %v34
    %v65 = vmul.f32 %v34, %v64
    %vm66 = vcmp.eq.f32.partialorder %v34, inf
    %v67 = vsel %vm66, %v34, %v65
    %vm68 = vcmp.eq.f32.partialorder %v34, 0.0
    %v69 = vand.u32 %v34, 2147483648
    %v70 = vsel %vm68, %v69, %v67
    %v71 = vmul.f32 %v70, %v46
    %v72 = vsel %vm51, %v71, 0.0
    %73 = vadd.xlane.f32.xlu0 %v72
    %v74 = vpop.xlane.xlu0 %73
    %v75 = vrot.slane %v74, 4
    %v76 = vadd.f32 %v74, %v75
    %v77 = vrot.slane %v76, 2
    %v78 = vadd.f32 %v76, %v77
    %v79 = vrot.slane %v78, 1
    %v80 = vadd.f32 %v78, %v79
    %s81 = vtos %v80
    %s82 = scalar_lea.smem [#allocation5], 1
    %83 = sst [smem:[%s82]] %s81
    %v84 = vrsqrt.pop %v38
    %v85 = vmul.f32 %v38, %v84
    %vm86 = vcmp.eq.f32.partialorder %v38, inf
    %v87 = vsel %vm86, %v38, %v85
    %vm88 = vcmp.eq.f32.partialorder %v38, 0.0
    %v89 = vand.u32 %v38, 2147483648
    %v90 = vsel %vm88, %v89, %v87
    %v91 = vmul.f32 %v90, %v46
    %v92 = vsel %vm51, %v91, 0.0
    %93 = vadd.xlane.f32.xlu0 %v92
    %v94 = vpop.xlane.xlu0 %93
    %v95 = vrot.slane %v94, 4
    %v96 = vadd.f32 %v94, %v95
    %v97 = vrot.slane %v96, 2
    %v98 = vadd.f32 %v96, %v97
    %v99 = vrot.slane %v98, 1
    %v100 = vadd.f32 %v98, %v99
    %s101 = vtos %v100
    %s102 = scalar_lea.smem [#allocation5], 2
    %103 = sst [smem:[%s102]] %s101
    // Predicated region
    $region10: #{tpu_custom_call.1} parent=1 // pred_check
      _
    $region11: #{tpu_custom_call.1} parent=1 // pred_check_branch
      %105 = sbr.rel (0) target = $region13
    $region12: #{tpu_custom_call.1} parent=1 // pred_region
      %s107 = ssub.s32 16, 16
      %108 = vsyncadd [#allocation4], %s107
      %111 = dma.smem_to_hbm [#allocation5], 16, %s1, [#allocation4]
    $region13: #{tpu_custom_call.1} parent=1 // pred_fallthru
      _
    // Predicated region
    $region14: #{tpu_custom_call.1} parent=1 // pred_check
      _
    $region15: #{tpu_custom_call.1} parent=1 // pred_check_branch
      %113 = sbr.rel (0) target = $region17
    $region16: #{tpu_custom_call.1} parent=1 // pred_region
      %114 = dma.done [#allocation4], 16
    $region17: #{tpu_custom_call.1} parent=1 // pred_fallthru
      _
    %115 = sfence
    %116 = vsyncpa [#allocation3], 1
    %117 = vsyncpa [#allocation4], 1

</llo_original>
